<compile_context>
chip_gen: v6e
topology: v6e:2x2x1
jax: 0.10.0
libtpu: 0.0.40
codegen_flags: <defaults>
</compile_context>

<pallas_src>
import functools

import jax
import jax.numpy as jnp
from jax import lax
from jax.experimental import pallas as pl
from jax.experimental.pallas import tpu as pltpu


def _round_up(n, m):
    return ((n + m - 1) // m) * m


def _attention_kernel(x_q_ref, x_kv_ref, w_qkv_ref, o_ref, *, seq_len, d_out_pad):
    # x_q_ref  : (TQ, D_IN_P)        query-row tile for this grid step
    # x_kv_ref : (S_PAD, D_IN_P)     full (padded) sequence, VMEM-resident across steps
    # w_qkv_ref: (D_IN_P, 3*D_OUT_P) fused [Wq*scale | Wk | Wv], VMEM-resident
    # o_ref    : (TQ, D_OUT_P)
    x_q = x_q_ref[...]
    x_kv = x_kv_ref[...]

    # Fused K|V projection in one wide MXU pass (N = 2*d_out_pad >= 256).
    w_kv = w_qkv_ref[:, d_out_pad:]
    kv = jnp.dot(x_kv, w_kv, preferred_element_type=jnp.float32)   # (S_PAD, 2*DOP)
    k = kv[:, :d_out_pad]
    v = kv[:, d_out_pad:]

    # Query projection for this tile; 1/sqrt(d_out) already folded into Wq columns.
    w_q = w_qkv_ref[:, :d_out_pad]
    q = jnp.dot(x_q, w_q, preferred_element_type=jnp.float32)      # (TQ, DOP)

    # scores = q @ k.T without materializing a transpose: contract last axes on the MXU.
    scores = lax.dot_general(
        q, k, (((1,), (1,)), ((), ())),
        preferred_element_type=jnp.float32)                         # (TQ, S_PAD)

    # Mask out padded key positions (seq_len is static at trace time).
    key_ids = lax.broadcasted_iota(jnp.int32, scores.shape, 1)
    scores = jnp.where(key_ids < seq_len, scores, jnp.float32(-1e30))

    # Numerically-stable softmax; divide -> approx reciprocal (EUP) + multiply (VPU).
    m = jnp.max(scores, axis=-1, keepdims=True)
    e = jnp.exp(scores - m)
    denom = jnp.sum(e, axis=-1, keepdims=True)
    w = e * pl.reciprocal(denom, approx=True)

    ctx = jnp.dot(w, v, preferred_element_type=jnp.float32)         # (TQ, DOP)
    o_ref[...] = ctx.astype(o_ref.dtype)


def self_attention_v1(x, w_query, w_key, w_value, *, tq=128):
    seq, d_in = x.shape
    d_out = w_query.shape[1]

    d_in_p = _round_up(max(d_in, 1), 128)
    d_out_p = _round_up(max(d_out, 1), 128)
    s_pad = _round_up(max(seq, 1), tq)

    # Fold the 1/sqrt(d_out) attention scale into W_query (done once by XLA, free).
    scale = 1.0 / (float(d_out) ** 0.5)
    wq = (w_query.astype(jnp.float32) * jnp.float32(scale))
    wk = w_key.astype(jnp.float32)
    wv = w_value.astype(jnp.float32)

    def pad2(a, rows, cols):
        return jnp.pad(a, ((0, rows - a.shape[0]), (0, cols - a.shape[1])))

    # Fused, lane-dense Q|K|V weight block.
    w_qkv = jnp.concatenate(
        [pad2(wq, d_in_p, d_out_p),
         pad2(wk, d_in_p, d_out_p),
         pad2(wv, d_in_p, d_out_p)], axis=1)                         # (d_in_p, 3*d_out_p)
    x_p = pad2(x.astype(jnp.float32), s_pad, d_in_p)                 # (s_pad, d_in_p)

    kernel = functools.partial(_attention_kernel, seq_len=seq, d_out_pad=d_out_p)

    out = pl.pallas_call(
        kernel,
        out_shape=jax.ShapeDtypeStruct((s_pad, d_out_p), jnp.float32),
        grid=(s_pad // tq,),
        in_specs=[
            pl.BlockSpec((tq, d_in_p), lambda i: (i, 0)),            # query-row tile
            pl.BlockSpec((s_pad, d_in_p), lambda i: (0, 0)),         # full x (resident)
            pl.BlockSpec((d_in_p, 3 * d_out_p), lambda i: (0, 0)),   # fused weights (resident)
        ],
        out_specs=pl.BlockSpec((tq, d_out_p), lambda i: (i, 0)),
        compiler_params=pltpu.CompilerParams(
            dimension_semantics=("parallel",)),
    )(x_p, x_p, w_qkv)

    # Slice off the lane / sequence padding.
    return out[:seq, :d_out].astype(x.dtype)


def self_attention_ref(x, w_query, w_key, w_value):
    q = x @ w_query
    k = x @ w_key
    v = x @ w_value
    scores = q @ k.T / jnp.sqrt(jnp.float32(k.shape[-1]))
    w = jax.nn.softmax(scores, axis=-1)
    return w @ v


if __name__ == "__main__":
    # Inputs from the PyTorch script: (seq=6, d_in=3), d_out=2.
    x = jnp.array(
        [[0.43, 0.15, 0.89],
         [0.55, 0.87, 0.66],
         [0.57, 0.85, 0.64],
         [0.22, 0.58, 0.33],
         [0.77, 0.25, 0.10],
         [0.05, 0.80, 0.55]], dtype=jnp.float32)

    d_in, d_out = 3, 2
    key = jax.random.PRNGKey(0)
    kq, kk, kv = jax.random.split(key, 3)
    # Deterministic analogue of torch.rand(d_in, d_out): uniform [0, 1).
    w_query = jax.random.uniform(kq, (d_in, d_out), dtype=jnp.float32)
    w_key = jax.random.uniform(kk, (d_in, d_out), dtype=jnp.float32)
    w_value = jax.random.uniform(kv, (d_in, d_out), dtype=jnp.float32)

    out = self_attention_v1(x, w_query, w_key, w_value)
    out = jax.block_until_ready(out)

    ref = self_attention_ref(x, w_query, w_key, w_value)
    assert out.shape == (6, d_out)
    # Slightly relaxed tolerance: softmax denominator uses the EUP approx reciprocal.
    assert jnp.allclose(out, ref, atol=2e-3, rtol=2e-3), (out, ref)
    print("KERNEL_OK")
</pallas_src>

<mosaic_0001>
module attributes {stable_mosaic.version = 11 : i64} {
  func.func @_attention_kernel(%arg0: i32, %arg1: memref<128x128xf32, #tpu.memory_space<vmem>>, %arg2: memref<128x128xf32, #tpu.memory_space<vmem>>, %arg3: memref<128x384xf32, #tpu.memory_space<vmem>>, %arg4: memref<128x128xf32, #tpu.memory_space<vmem>>) attributes {dimension_semantics = [#tpu.dimension_semantics<parallel>], iteration_bounds = array<i64: 1>, scalar_prefetch = 0 : i64, scratch_operands = 0 : i64, tpu.core_type = #tpu.core_type<tc>, window_params = [{transform_indices = @transform_0, window_bounds = array<i64: 128, 128>}, {pipeline_mode = #tpu.pipeline_mode<synchronous>, transform_indices = @transform_1, window_bounds = array<i64: 128, 128>}, {pipeline_mode = #tpu.pipeline_mode<synchronous>, transform_indices = @transform_2, window_bounds = array<i64: 128, 384>}, {transform_indices = @transform_3, window_bounds = array<i64: 128, 128>}]} {
    %c0 = arith.constant 0 : index
    %c0_0 = arith.constant 0 : index
    %0 = vector.load %arg1[%c0, %c0_0] : memref<128x128xf32, #tpu.memory_space<vmem>>, vector<128x128xf32>
    %c0_1 = arith.constant 0 : index
    %c0_2 = arith.constant 0 : index
    %1 = vector.load %arg2[%c0_1, %c0_2] : memref<128x128xf32, #tpu.memory_space<vmem>>, vector<128x128xf32>
    %c0_3 = arith.constant 0 : index
    %c128 = arith.constant 128 : index
    %2 = vector.load %arg3[%c0_3, %c128] : memref<128x384xf32, #tpu.memory_space<vmem>>, vector<128x256xf32>
    %cst = arith.constant dense<0.000000e+00> : vector<128x256xf32>
    %3 = tpu.matmul %1, %2, %cst {dimension_numbers = #tpu.dot_dimension_numbers<[1], [0], [0], [1], [0, 0, 1, 1], [], []>} : vector<128x128xf32>, vector<128x256xf32>, vector<128x256xf32> -> vector<128x256xf32>
    %4 = vector.extract_strided_slice %3 {offsets = [0, 0], sizes = [128, 128], strides = [1, 1]} : vector<128x256xf32> to vector<128x128xf32>
    %5 = vector.extract_strided_slice %3 {offsets = [0, 128], sizes = [128, 128], strides = [1, 1]} : vector<128x256xf32> to vector<128x128xf32>
    %c0_4 = arith.constant 0 : index
    %c0_5 = arith.constant 0 : index
    %6 = vector.load %arg3[%c0_4, %c0_5] : memref<128x384xf32, #tpu.memory_space<vmem>>, vector<128x128xf32>
    %cst_6 = arith.constant dense<0.000000e+00> : vector<128x128xf32>
    %7 = tpu.matmul %0, %6, %cst_6 {dimension_numbers = #tpu.dot_dimension_numbers<[1], [0], [0], [1], [0, 0, 1, 1], [], []>} : vector<128x128xf32>, vector<128x128xf32>, vector<128x128xf32> -> vector<128x128xf32>
    %cst_7 = arith.constant dense<0.000000e+00> : vector<128x128xf32>
    %8 = tpu.matmul %7, %4, %cst_7 {dimension_numbers = #tpu.dot_dimension_numbers<[1], [1], [0], [0], [0, 0, 1, 0], [], []>} : vector<128x128xf32>, vector<128x128xf32>, vector<128x128xf32> -> vector<128x128xf32>
    %9 = tpu.iota {dimensions = array<i32: 1>} : vector<128x128xi32>
    %c6_i32 = arith.constant 6 : i32
    %10 = vector.broadcast %c6_i32 : i32 to vector<128x128xi32>
    %11 = arith.cmpi slt, %9, %10 : vector<128x128xi32>
    %cst_8 = arith.constant -1.000000e+30 : f32
    %12 = vector.broadcast %cst_8 : f32 to vector<128x128xf32>
    %13 = arith.select %11, %8, %12 : vector<128x128xi1>, vector<128x128xf32>
    %cst_9 = arith.constant dense<0xFF800000> : vector<128xf32>
    %14 = vector.multi_reduction <maximumf>, %13, %cst_9 [1] : vector<128x128xf32> to vector<128xf32>
    %15 = vector.shape_cast %14 : vector<128xf32> to vector<128x1xf32>
    %16 = vector.broadcast %15 : vector<128x1xf32> to vector<128x128xf32>
    %17 = arith.subf %13, %16 : vector<128x128xf32>
    %18 = math.exp %17 : vector<128x128xf32>
    %cst_10 = arith.constant dense<0.000000e+00> : vector<128xf32>
    %19 = vector.multi_reduction <add>, %18, %cst_10 [1] : vector<128x128xf32> to vector<128xf32>
    %20 = vector.shape_cast %19 : vector<128xf32> to vector<128x1xf32>
    %21 = tpu.reciprocal %20 {approx = true} : vector<128x1xf32> -> vector<128x1xf32>
    %22 = vector.broadcast %21 : vector<128x1xf32> to vector<128x128xf32>
    %23 = arith.mulf %18, %22 : vector<128x128xf32>
    %cst_11 = arith.constant dense<0.000000e+00> : vector<128x128xf32>
    %24 = tpu.matmul %23, %5, %cst_11 {dimension_numbers = #tpu.dot_dimension_numbers<[1], [0], [0], [1], [0, 0, 1, 1], [], []>} : vector<128x128xf32>, vector<128x128xf32>, vector<128x128xf32> -> vector<128x128xf32>
    %c0_12 = arith.constant 0 : index
    %c0_13 = arith.constant 0 : index
    %25 = vector.load %arg4[%c0_12, %c0_13] : memref<128x128xf32, #tpu.memory_space<vmem>>, vector<128x128xf32>
    tpu.vector_store %arg4[%c0_12, %c0_13], %24 {strides = array<i32>} : memref<128x128xf32, #tpu.memory_space<vmem>>, vector<128x128xf32>,
    return
  }
  func.func @transform_0(%arg0: i32) -> (i32, i32) {
    %c0_i32 = arith.constant 0 : i32
    %c0_i32_0 = arith.constant 0 : i32
    return %arg0, %c0_i32 : i32, i32
  }
  func.func @transform_1(%arg0: i32) -> (i32, i32) {
    %c0_i32 = arith.constant 0 : i32
    %c0_i32_0 = arith.constant 0 : i32
    %c0_i32_1 = arith.constant 0 : i32
    return %c0_i32, %c0_i32_0 : i32, i32
  }
  func.func @transform_2(%arg0: i32) -> (i32, i32) {
    %c0_i32 = arith.constant 0 : i32
    %c0_i32_0 = arith.constant 0 : i32
    %c0_i32_1 = arith.constant 0 : i32
    return %c0_i32, %c0_i32_0 : i32, i32
  }
  func.func @transform_3(%arg0: i32) -> (i32, i32) {
    %c0_i32 = arith.constant 0 : i32
    %c0_i32_0 = arith.constant 0 : i32
    return %arg0, %c0_i32 : i32, i32
  }
}

</mosaic_0001>

<llo_original>
// kernel: tpu_custom_call.1
$region0: #{tpu_custom_call.1}
  #allocation0 [shape = 'u32[]', space=smem, size = 0x4, offset = 0x4, fixed_abs, tag = 'smem constant byte address 0x4 - core index']
  #allocation1 [shape = 'u32[144,128]{1,0:T(1,128)}', space=vmem, size = 0x12000, scoped, tag = 'internal scratch']
  %s0 = inlined_call_operand.hbm [shape: f32[128,128], index: 0, kind: input, shape index: {}]
  %s1 = inlined_call_operand.hbm [shape: f32[128,128], index: 1, kind: input, shape index: {}]
  %s2 = inlined_call_operand.hbm [shape: f32[128,384], index: 2, kind: input, shape index: {}]
  %s3 = inlined_call_operand.hbm [shape: f32[128,128], index: 3, kind: output, shape index: {}]
  %s4 = sld [smem:[#allocation0]]
  $region34: #{tpu_custom_call.1} parent=0
    _
  %s6 = ssub.s32 1, %s4
  %s7 = scalar_select 0, %s6, %s4
  $region1: #{tpu_custom_call.1} parent=0
    #allocation2 [shape = 'u8[65536]{0}', space=vmem, size = 0x10000, scoped, tag = 'input window, operand 0, single buffered']
    #allocation3 [shape = 's32[1]{0}', space=sflag, size = 0x4, scoped, tag = 'scoped memory for tpu_custom_call.1']
    #allocation4 [shape = 's32[1]{0}', space=sflag, size = 0x4, scoped, tag = 'scoped memory for tpu_custom_call.1']
    #allocation5 [shape = 'u8[65536]{0}', space=vmem, size = 0x10000, scoped, tag = 'input window, operand 1, single buffered']
    #allocation6 [shape = 's32[1]{0}', space=sflag, size = 0x4, scoped, tag = 'scoped memory for tpu_custom_call.1']
    #allocation7 [shape = 'u8[196608]{0}', space=vmem, size = 0x30000, scoped, tag = 'input window, operand 2, single buffered']
    #allocation8 [shape = 'u8[65536]{0}', space=vmem, size = 0x10000, scoped, tag = 'output window, operand 0, single buffered']
    %8 = vsyncpa [#allocation3], 0
    %9 = vsyncpa [#allocation6], 0
    %10 = vsyncpa [#allocation4], 0
    // Predicated region
    $region2: #{tpu_custom_call.1} parent=1 // pred_check
      _
    $region3: #{tpu_custom_call.1} parent=1 // pred_check_branch
      %12 = sbr.rel (0) target = $region5
    $region4: #{tpu_custom_call.1} parent=1 // pred_region
      %s14 = ssub.s32 2048, 2048
      %15 = vsyncadd [#allocation3], %s14
      %s16 = sshll.u32 [#allocation2], 4
      %s17 = int_to_ptr.vmem [resolvable:$true] %s16
      %22 = dma.hbm_to_vmem [thread:$0]  %s0, 2048, %s17, [#allocation3], 128, 128, 8
    $region5: #{tpu_custom_call.1} parent=1 // pred_fallthru
      _
    // Predicated region
    $region6: #{tpu_custom_call.1} parent=1 // pred_check
      _
    $region7: #{tpu_custom_call.1} parent=1 // pred_check_branch
      %24 = sbr.rel (0) target = $region9
    $region8: #{tpu_custom_call.1} parent=1 // pred_region
      %s26 = ssub.s32 2048, 2048
      %27 = vsyncadd [#allocation6], %s26
      %s28 = sshll.u32 [#allocation5], 4
      %s29 = int_to_ptr.vmem [resolvable:$true] %s28
      %34 = dma.hbm_to_vmem [thread:$0]  %s1, 2048, %s29, [#allocation6], 128, 128, 8
    $region9: #{tpu_custom_call.1} parent=1 // pred_fallthru
      _
    // Predicated region
    $region10: #{tpu_custom_call.1} parent=1 // pred_check
      _
    $region11: #{tpu_custom_call.1} parent=1 // pred_check_branch
      %36 = sbr.rel (0) target = $region13
    $region12: #{tpu_custom_call.1} parent=1 // pred_region
      %s38 = ssub.s32 6144, 6144
      %39 = vsyncadd [#allocation6], %s38
      %s40 = sshll.u32 [#allocation7], 4
      %s41 = int_to_ptr.vmem [resolvable:$true] %s40
      %46 = dma.hbm_to_vmem [thread:$0]  %s2, 6144, %s41, [#allocation6], 384, 384, 24
    $region13: #{tpu_custom_call.1} parent=1 // pred_fallthru
      _
    // Predicated region
    $region14: #{tpu_custom_call.1} parent=1 // pred_check
      _
    $region15: #{tpu_custom_call.1} parent=1 // pred_check_branch
      %48 = sbr.rel (0) target = $region17
    $region16: #{tpu_custom_call.1} parent=1 // pred_region
      %49 = dma.done [#allocation3], 2048
    $region17: #{tpu_custom_call.1} parent=1 // pred_fallthru
      _
    // Predicated region
    $region18: #{tpu_custom_call.1} parent=1 // pred_check
      _
    $region19: #{tpu_custom_call.1} parent=1 // pred_check_branch
      %51 = sbr.rel (0) target = $region21
    $region20: #{tpu_custom_call.1} parent=1 // pred_region
      %52 = dma.done [#allocation6], 2048
    $region21: #{tpu_custom_call.1} parent=1 // pred_fallthru
      _
    // Predicated region
    $region22: #{tpu_custom_call.1} parent=1 // pred_check
      _
    $region23: #{tpu_custom_call.1} parent=1 // pred_check_branch
      %54 = sbr.rel (0) target = $region25
    $region24: #{tpu_custom_call.1} parent=1 // pred_region
      %55 = dma.done [#allocation6], 6144
    $region25: #{tpu_custom_call.1} parent=1 // pred_fallthru
      _
    %v56 = vld [vmem:[#allocation2] sm:$0xff]
    %v57 = vld [vmem:[#allocation2 + $0x8] sm:$0xff]
    %v58 = vld [vmem:[#allocation2 + $0x10] sm:$0xff]
    %v59 = vld [vmem:[#allocation2 + $0x18] sm:$0xff]
    %v60 = vld [vmem:[#allocation2 + $0x20] sm:$0xff]
    %v61 = vld [vmem:[#allocation2 + $0x28] sm:$0xff]
    %v62 = vld [vmem:[#allocation2 + $0x30] sm:$0xff]
    %v63 = vld [vmem:[#allocation2 + $0x38] sm:$0xff]
    %v64 = vld [vmem:[#allocation2 + $0x40] sm:$0xff]
    %v65 = vld [vmem:[#allocation2 + $0x48] sm:$0xff]
    %v66 = vld [vmem:[#allocation2 + $0x50] sm:$0xff]
    %v67 = vld [vmem:[#allocation2 + $0x58] sm:$0xff]
    %v68 = vld [vmem:[#allocation2 + $0x60] sm:$0xff]
    %v69 = vld [vmem:[#allocation2 + $0x68] sm:$0xff]
    %v70 = vld [vmem:[#allocation2 + $0x70] sm:$0xff]
    %v71 = vld [vmem:[#allocation2 + $0x78] sm:$0xff]
    %v72 = vld [vmem:[#allocation5] sm:$0xff]
    %v73 = vld [vmem:[#allocation5 + $0x8] sm:$0xff]
    %v74 = vld [vmem:[#allocation5 + $0x10] sm:$0xff]
    %v75 = vld [vmem:[#allocation5 + $0x18] sm:$0xff]
    %v76 = vld [vmem:[#allocation5 + $0x20] sm:$0xff]
    %v77 = vld [vmem:[#allocation5 + $0x28] sm:$0xff]
    %v78 = vld [vmem:[#allocation5 + $0x30] sm:$0xff]
    %v79 = vld [vmem:[#allocation5 + $0x38] sm:$0xff]
    %v80 = vld [vmem:[#allocation5 + $0x40] sm:$0xff]
    %v81 = vld [vmem:[#allocation5 + $0x48] sm:$0xff]
    %v82 = vld [vmem:[#allocation5 + $0x50] sm:$0xff]
    %v83 = vld [vmem:[#allocation5 + $0x58] sm:$0xff]
    %v84 = vld [vmem:[#allocation5 + $0x60] sm:$0xff]
    %v85 = vld [vmem:[#allocation5 + $0x68] sm:$0xff]
    %v86 = vld [vmem:[#allocation5 + $0x70] sm:$0xff]
    %v87 = vld [vmem:[#allocation5 + $0x78] sm:$0xff]
    %v88 = vld [vmem:[#allocation7 + $0x8] sm:$0xff]
    %v89 = vld [vmem:[#allocation7 + $0x10] sm:$0xff]
    %v90 = vld [vmem:[#allocation7 + $0x20] sm:$0xff]
    %v91 = vld [vmem:[#allocation7 + $0x28] sm:$0xff]
    %v92 = vld [vmem:[#allocation7 + $0x38] sm:$0xff]
    %v93 = vld [vmem:[#allocation7 + $0x40] sm:$0xff]
    %v94 = vld [vmem:[#allocation7 + $0x50] sm:$0xff]
    %v95 = vld [vmem:[#allocation7 + $0x58] sm:$0xff]
    %v96 = vld [vmem:[#allocation7 + $0x68] sm:$0xff]
    %v97 = vld [vmem:[#allocation7 + $0x70] sm:$0xff]
    %v98 = vld [vmem:[#allocation7 + $0x80] sm:$0xff]
    %v99 = vld [vmem:[#allocation7 + $0x88] sm:$0xff]
    %v100 = vld [vmem:[#allocation7 + $0x98] sm:$0xff]
    %v101 = vld [vmem:[#allocation7 + $0xa0] sm:$0xff]
    %v102 = vld [vmem:[#allocation7 + $0xb0] sm:$0xff]
    %v103 = vld [vmem:[#allocation7 + $0xb8] sm:$0xff]
    %v104 = vld [vmem:[#allocation7 + $0xc8] sm:$0xff]
    %v105 = vld [vmem:[#allocation7 + $0xd0] sm:$0xff]
    %v106 = vld [vmem:[#allocation7 + $0xe0] sm:$0xff]
    %v107 = vld [vmem:[#allocation7 + $0xe8] sm:$0xff]
    %v108 = vld [vmem:[#allocation7 + $0xf8] sm:$0xff]
    %v109 = vld [vmem:[#allocation7 + $0x100] sm:$0xff]
    %v110 = vld [vmem:[#allocation7 + $0x110] sm:$0xff]
    %v111 = vld [vmem:[#allocation7 + $0x118] sm:$0xff]
    %v112 = vld [vmem:[#allocation7 + $0x128] sm:$0xff]
    %v113 = vld [vmem:[#allocation7 + $0x130] sm:$0xff]
    %v114 = vld [vmem:[#allocation7 + $0x140] sm:$0xff]
    %v115 = vld [vmem:[#allocation7 + $0x148] sm:$0xff]
    %v116 = vld [vmem:[#allocation7 + $0x158] sm:$0xff]
    %v117 = vld [vmem:[#allocation7 + $0x160] sm:$0xff]
    %v118 = vld [vmem:[#allocation7 + $0x170] sm:$0xff]
    %v119 = vld [vmem:[#allocation7 + $0x178] sm:$0xff]
    %120 = vmatprep.subr.mxu0 %v119
    %121 = vmatpush1.msra.mxu0 %v118
    %122 = vmatprep.subr.mxu0 %v117
    %123 = vmatpush1.msra.mxu0 %v116
    %124 = vmatprep.subr.mxu0 %v115
    %125 = vmatpush1.msra.mxu0 %v114
    %126 = vmatprep.subr.mxu0 %v113
    %127 = vmatpush1.msra.mxu0 %v112
    %128 = vmatprep.subr.mxu0 %v111
    %129 = vmatpush1.msra.mxu0 %v110
    %130 = vmatprep.subr.mxu0 %v109
    %131 = vmatpush1.msra.mxu0 %v108
    %132 = vmatprep.subr.mxu0 %v107
    %133 = vmatpush1.msra.mxu0 %v106
    %134 = vmatprep.subr.mxu0 %v105
    %135 = vmatpush1.msra.mxu0 %v104
    %136 = vmatprep.subr.mxu0 %v103
    %137 = vmatpush1.msra.mxu0 %v102
    %138 = vmatprep.subr.mxu0 %v101
    %139 = vmatpush1.msra.mxu0 %v100
    %140 = vmatprep.subr.mxu0 %v99
    %141 = vmatpush1.msra.mxu0 %v98
    %142 = vmatprep.subr.mxu0 %v97
    %143 = vmatpush1.msra.mxu0 %v96
    %144 = vmatprep.subr.mxu0 %v95
    %145 = vmatpush1.msra.mxu0 %v94
    %146 = vmatprep.subr.mxu0 %v93
    %147 = vmatpush1.msra.mxu0 %v92
    %148 = vmatprep.subr.mxu0 %v91
    %149 = vmatpush1.msra.mxu0 %v90
    %150 = vmatprep.subr.mxu0 %v89
    %151 = vmatpush1.msra.mxu0 %v88
    %152 = vmatprep.subr.mxu0 0.0
    %153 = vmatpush2.msra.mxu0 0.0
    %154 = vmatprep.subr.mxu0 0.0
    %155 = vmatpush2.msra.mxu0 0.0
    %156 = vmatprep.subr.mxu0 0.0
    %157 = vmatpush2.msra.mxu0 0.0
    %158 = vmatprep.subr.mxu0 0.0
    %159 = vmatpush2.msra.mxu0 0.0
    %160 = vmatprep.subr.mxu0 0.0
    %161 = vmatpush2.msra.mxu0 0.0
    %162 = vmatprep.subr.mxu0 0.0
    %163 = vmatpush2.msra.mxu0 0.0
    %164 = vmatprep.subr.mxu0 0.0
    %165 = vmatpush2.msra.mxu0 0.0
    %166 = vmatprep.subr.mxu0 0.0
    %167 = vmatpush2.msra.mxu0 0.0
    %168 = vmatprep.subr.mxu0 0.0
    %169 = vmatpush2.msra.mxu0 0.0
    %170 = vmatprep.subr.mxu0 0.0
    %171 = vmatpush2.msra.mxu0 0.0
    %172 = vmatprep.subr.mxu0 0.0
    %173 = vmatpush2.msra.mxu0 0.0
    %174 = vmatprep.subr.mxu0 0.0
    %175 = vmatpush2.msra.mxu0 0.0
    %176 = vmatprep.subr.mxu0 0.0
    %177 = vmatpush2.msra.mxu0 0.0
    %178 = vmatprep.subr.mxu0 0.0
    %179 = vmatpush2.msra.mxu0 0.0
    %180 = vmatprep.subr.mxu0 0.0
    %181 = vmatpush2.msra.mxu0 0.0
    %182 = vmatprep.subr.mxu0 0.0
    %183 = vmatpush2.msra.mxu0 0.0
    %184 = vmatprep.mubr.f32.mxu0 0.0
    %185 = vmatmul.mubr.f32.gmra.mxu0 %v72
    %v186 = vpop.f32.mrf.mxu0
    %v187 = vadd.f32 0.0, %v186
    %v188 = vpop.f32.mrf.mxu0
    %v189 = vadd.f32 0.0, %v188
    %190 = vmatprep.mubr.f32.mxu0 0.0
    %191 = vmatmul.mubr.f32.gmra.mxu0 %v73
    %v192 = vpop.f32.mrf.mxu0
    %v193 = vadd.f32 0.0, %v192
    %v194 = vpop.f32.mrf.mxu0
    %v195 = vadd.f32 0.0, %v194
    %196 = vmatprep.mubr.f32.mxu0 0.0
    %197 = vmatmul.mubr.f32.gmra.mxu0 %v74
    %v198 = vpop.f32.mrf.mxu0
    %v199 = vadd.f32 0.0, %v198
    %v200 = vpop.f32.mrf.mxu0
    %v201 = vadd.f32 0.0, %v200
    %202 = vmatprep.mubr.f32.mxu0 0.0
    %203 = vmatmul.mubr.f32.gmra.mxu0 %v75
    %v204 = vpop.f32.mrf.mxu0
    %v205 = vadd.f32 0.0, %v204
    %v206 = vpop.f32.mrf.mxu0
    %v207 = vadd.f32 0.0, %v206
    %208 = vmatprep.mubr.f32.mxu0 0.0
    %209 = vmatmul.mubr.f32.gmra.mxu0 %v76
    %v210 = vpop.f32.mrf.mxu0
    %v211 = vadd.f32 0.0, %v210
    %v212 = vpop.f32.mrf.mxu0
    %v213 = vadd.f32 0.0, %v212
    %214 = vmatprep.mubr.f32.mxu0 0.0
    %215 = vmatmul.mubr.f32.gmra.mxu0 %v77
    %v216 = vpop.f32.mrf.mxu0
    %v217 = vadd.f32 0.0, %v216
    %v218 = vpop.f32.mrf.mxu0
    %v219 = vadd.f32 0.0, %v218
    %220 = vmatprep.mubr.f32.mxu0 0.0
    %221 = vmatmul.mubr.f32.gmra.mxu0 %v78
    %v222 = vpop.f32.mrf.mxu0
    %v223 = vadd.f32 0.0, %v222
    %v224 = vpop.f32.mrf.mxu0
    %v225 = vadd.f32 0.0, %v224
    %226 = vmatprep.mubr.f32.mxu0 0.0
    %227 = vmatmul.mubr.f32.gmra.mxu0 %v79
    %v228 = vpop.f32.mrf.mxu0
    %v229 = vadd.f32 0.0, %v228
    %v230 = vpop.f32.mrf.mxu0
    %v231 = vadd.f32 0.0, %v230
    %232 = vmatprep.mubr.f32.mxu0 0.0
    %233 = vmatmul.mubr.f32.gmra.mxu0 %v80
    %v234 = vpop.f32.mrf.mxu0
    %v235 = vadd.f32 0.0, %v234
    %v236 = vpop.f32.mrf.mxu0
    %v237 = vadd.f32 0.0, %v236
    %238 = vmatprep.mubr.f32.mxu0 0.0
    %239 = vmatmul.mubr.f32.gmra.mxu0 %v81
    %v240 = vpop.f32.mrf.mxu0
    %v241 = vadd.f32 0.0, %v240
    %v242 = vpop.f32.mrf.mxu0
    %v243 = vadd.f32 0.0, %v242
    %244 = vmatprep.mubr.f32.mxu0 0.0
    %245 = vmatmul.mubr.f32.gmra.mxu0 %v82
    %v246 = vpop.f32.mrf.mxu0
    %v247 = vadd.f32 0.0, %v246
    %v248 = vpop.f32.mrf.mxu0
    %v249 = vadd.f32 0.0, %v248
    %250 = vmatprep.mubr.f32.mxu0 0.0
    %251 = vmatmul.mubr.f32.gmra.mxu0 %v83
    %v252 = vpop.f32.mrf.mxu0
    %v253 = vadd.f32 0.0, %v252
    %v254 = vpop.f32.mrf.mxu0
    %v255 = vadd.f32 0.0, %v254
    %256 = vmatprep.mubr.f32.mxu0 0.0
    %257 = vmatmul.mubr.f32.gmra.mxu0 %v84
    %v258 = vpop.f32.mrf.mxu0
    %v259 = vadd.f32 0.0, %v258
    %v260 = vpop.f32.mrf.mxu0
    %v261 = vadd.f32 0.0, %v260
    %262 = vmatprep.mubr.f32.mxu0 0.0
    %263 = vmatmul.mubr.f32.gmra.mxu0 %v85
    %v264 = vpop.f32.mrf.mxu0
    %v265 = vadd.f32 0.0, %v264
    %v266 = vpop.f32.mrf.mxu0
    %v267 = vadd.f32 0.0, %v266
    %268 = vmatprep.mubr.f32.mxu0 0.0
    %269 = vmatmul.mubr.f32.gmra.mxu0 %v86
    %v270 = vpop.f32.mrf.mxu0
    %v271 = vadd.f32 0.0, %v270
    %v272 = vpop.f32.mrf.mxu0
    %v273 = vadd.f32 0.0, %v272
    %274 = vmatprep.mubr.f32.mxu0 0.0
    %275 = vmatmul.mubr.f32.gmra.mxu0 %v87
    %v276 = vpop.f32.mrf.mxu0
    %v277 = vadd.f32 0.0, %v276
    %v278 = vpop.f32.mrf.mxu0
    %v279 = vadd.f32 0.0, %v278
    %280 = vdwg.mxu0
    %v281 = vld [vmem:[#allocation7] sm:$0xff]
    %v282 = vld [vmem:[#allocation7 + $0x18] sm:$0xff]
    %v283 = vld [vmem:[#allocation7 + $0x30] sm:$0xff]
    %v284 = vld [vmem:[#allocation7 + $0x48] sm:$0xff]
    %v285 = vld [vmem:[#allocation7 + $0x60] sm:$0xff]
    %v286 = vld [vmem:[#allocation7 + $0x78] sm:$0xff]
    %v287 = vld [vmem:[#allocation7 + $0x90] sm:$0xff]
    %v288 = vld [vmem:[#allocation7 + $0xa8] sm:$0xff]
    %v289 = vld [vmem:[#allocation7 + $0xc0] sm:$0xff]
    %v290 = vld [vmem:[#allocation7 + $0xd8] sm:$0xff]
    %v291 = vld [vmem:[#allocation7 + $0xf0] sm:$0xff]
    %v292 = vld [vmem:[#allocation7 + $0x108] sm:$0xff]
    %v293 = vld [vmem:[#allocation7 + $0x120] sm:$0xff]
    %v294 = vld [vmem:[#allocation7 + $0x138] sm:$0xff]
    %v295 = vld [vmem:[#allocation7 + $0x150] sm:$0xff]
    %v296 = vld [vmem:[#allocation7 + $0x168] sm:$0xff]
    %297 = vmatprep.subr.mxu0 0.0
    %298 = vmatpush1.msra.mxu0 %v296
    %299 = vmatprep.subr.mxu0 0.0
    %300 = vmatpush1.msra.mxu0 %v295
    %301 = vmatprep.subr.mxu0 0.0
    %302 = vmatpush1.msra.mxu0 %v294
    %303 = vmatprep.subr.mxu0 0.0
    %304 = vmatpush1.msra.mxu0 %v293
    %305 = vmatprep.subr.mxu0 0.0
    %306 = vmatpush1.msra.mxu0 %v292
    %307 = vmatprep.subr.mxu0 0.0
    %308 = vmatpush1.msra.mxu0 %v291
    %309 = vmatprep.subr.mxu0 0.0
    %310 = vmatpush1.msra.mxu0 %v290
    %311 = vmatprep.subr.mxu0 0.0
    %312 = vmatpush1.msra.mxu0 %v289
    %313 = vmatprep.subr.mxu0 0.0
    %314 = vmatpush1.msra.mxu0 %v288
    %315 = vmatprep.subr.mxu0 0.0
    %316 = vmatpush1.msra.mxu0 %v287
    %317 = vmatprep.subr.mxu0 0.0
    %318 = vmatpush1.msra.mxu0 %v286
    %319 = vmatprep.subr.mxu0 0.0
    %320 = vmatpush1.msra.mxu0 %v285
    %321 = vmatprep.subr.mxu0 0.0
    %322 = vmatpush1.msra.mxu0 %v284
    %323 = vmatprep.subr.mxu0 0.0
    %324 = vmatpush1.msra.mxu0 %v283
    %325 = vmatprep.subr.mxu0 0.0
    %326 = vmatpush1.msra.mxu0 %v282
    %327 = vmatprep.subr.mxu0 0.0
    %328 = vmatpush1.msra.mxu0 %v281
    %329 = vmatprep.subr.mxu0 0.0
    %330 = vmatpush2.msra.mxu0 0.0
    %331 = vmatprep.subr.mxu0 0.0
    %332 = vmatpush2.msra.mxu0 0.0
    %333 = vmatprep.subr.mxu0 0.0
    %334 = vmatpush2.msra.mxu0 0.0
    %335 = vmatprep.subr.mxu0 0.0
    %336 = vmatpush2.msra.mxu0 0.0
    %337 = vmatprep.subr.mxu0 0.0
    %338 = vmatpush2.msra.mxu0 0.0
    %339 = vmatprep.subr.mxu0 0.0
    %340 = vmatpush2.msra.mxu0 0.0
    %341 = vmatprep.subr.mxu0 0.0
    %342 = vmatpush2.msra.mxu0 0.0
    %343 = vmatprep.subr.mxu0 0.0
    %344 = vmatpush2.msra.mxu0 0.0
    %345 = vmatprep.subr.mxu0 0.0
    %346 = vmatpush2.msra.mxu0 0.0
    %347 = vmatprep.subr.mxu0 0.0
    %348 = vmatpush2.msra.mxu0 0.0
    %349 = vmatprep.subr.mxu0 0.0
    %350 = vmatpush2.msra.mxu0 0.0
    %351 = vmatprep.subr.mxu0 0.0
    %352 = vmatpush2.msra.mxu0 0.0
    %353 = vmatprep.subr.mxu0 0.0
    %354 = vmatpush2.msra.mxu0 0.0
    %355 = vmatprep.subr.mxu0 0.0
    %356 = vmatpush2.msra.mxu0 0.0
    %357 = vmatprep.subr.mxu0 0.0
    %358 = vmatpush2.msra.mxu0 0.0
    %359 = vmatprep.subr.mxu0 0.0
    %360 = vmatpush2.msra.mxu0 0.0
    %361 = vmatprep.mubr.f32.mxu0 0.0
    %362 = vmatmul.mubr.f32.gmra.mxu0 %v56
    %v363 = vpop.f32.mrf.mxu0
    %v364 = vadd.f32 0.0, %v363
    %v365 = vpop.f32.mrf.mxu0
    %366 = vmatprep.mubr.f32.mxu0 0.0
    %367 = vmatmul.mubr.f32.gmra.mxu0 %v57
    %v368 = vpop.f32.mrf.mxu0
    %v369 = vadd.f32 0.0, %v368
    %v370 = vpop.f32.mrf.mxu0
    %371 = vmatprep.mubr.f32.mxu0 0.0
    %372 = vmatmul.mubr.f32.gmra.mxu0 %v58
    %v373 = vpop.f32.mrf.mxu0
    %v374 = vadd.f32 0.0, %v373
    %v375 = vpop.f32.mrf.mxu0
    %376 = vmatprep.mubr.f32.mxu0 0.0
    %377 = vmatmul.mubr.f32.gmra.mxu0 %v59
    %v378 = vpop.f32.mrf.mxu0
    %v379 = vadd.f32 0.0, %v378
    %v380 = vpop.f32.mrf.mxu0
    %381 = vmatprep.mubr.f32.mxu0 0.0
    %382 = vmatmul.mubr.f32.gmra.mxu0 %v60
    %v383 = vpop.f32.mrf.mxu0
    %v384 = vadd.f32 0.0, %v383
    %v385 = vpop.f32.mrf.mxu0
    %386 = vmatprep.mubr.f32.mxu0 0.0
    %387 = vmatmul.mubr.f32.gmra.mxu0 %v61
    %v388 = vpop.f32.mrf.mxu0
    %v389 = vadd.f32 0.0, %v388
    %v390 = vpop.f32.mrf.mxu0
    %391 = vmatprep.mubr.f32.mxu0 0.0
    %392 = vmatmul.mubr.f32.gmra.mxu0 %v62
    %v393 = vpop.f32.mrf.mxu0
    %v394 = vadd.f32 0.0, %v393
    %v395 = vpop.f32.mrf.mxu0
    %396 = vmatprep.mubr.f32.mxu0 0.0
    %397 = vmatmul.mubr.f32.gmra.mxu0 %v63
    %v398 = vpop.f32.mrf.mxu0
    %v399 = vadd.f32 0.0, %v398
    %v400 = vpop.f32.mrf.mxu0
    %401 = vmatprep.mubr.f32.mxu0 0.0
    %402 = vmatmul.mubr.f32.gmra.mxu0 %v64
    %v403 = vpop.f32.mrf.mxu0
    %v404 = vadd.f32 0.0, %v403
    %v405 = vpop.f32.mrf.mxu0
    %406 = vmatprep.mubr.f32.mxu0 0.0
    %407 = vmatmul.mubr.f32.gmra.mxu0 %v65
    %v408 = vpop.f32.mrf.mxu0
    %v409 = vadd.f32 0.0, %v408
    %v410 = vpop.f32.mrf.mxu0
    %411 = vmatprep.mubr.f32.mxu0 0.0
    %412 = vmatmul.mubr.f32.gmra.mxu0 %v66
    %v413 = vpop.f32.mrf.mxu0
    %v414 = vadd.f32 0.0, %v413
    %v415 = vpop.f32.mrf.mxu0
    %416 = vmatprep.mubr.f32.mxu0 0.0
    %417 = vmatmul.mubr.f32.gmra.mxu0 %v67
    %v418 = vpop.f32.mrf.mxu0
    %v419 = vadd.f32 0.0, %v418
    %v420 = vpop.f32.mrf.mxu0
    %421 = vmatprep.mubr.f32.mxu0 0.0
    %422 = vmatmul.mubr.f32.gmra.mxu0 %v68
    %v423 = vpop.f32.mrf.mxu0
    %v424 = vadd.f32 0.0, %v423
    %v425 = vpop.f32.mrf.mxu0
    %426 = vmatprep.mubr.f32.mxu0 0.0
    %427 = vmatmul.mubr.f32.gmra.mxu0 %v69
    %v428 = vpop.f32.mrf.mxu0
    %v429 = vadd.f32 0.0, %v428
    %v430 = vpop.f32.mrf.mxu0
    %431 = vmatprep.mubr.f32.mxu0 0.0
    %432 = vmatmul.mubr.f32.gmra.mxu0 %v70
    %v433 = vpop.f32.mrf.mxu0
    %v434 = vadd.f32 0.0, %v433
    %v435 = vpop.f32.mrf.mxu0
    %436 = vmatprep.mubr.f32.mxu0 0.0
    %437 = vmatmul.mubr.f32.gmra.mxu0 %v71
    %v438 = vpop.f32.mrf.mxu0
    %v439 = vadd.f32 0.0, %v438
    %v440 = vpop.f32.mrf.mxu0
    %441 = vdwg.mxu0
    %442 = vmatprep.subr.mxu0 0.0
    %443 = vmatpush1.xpose.msra.mxu0 %v277
    %444 = vmatprep.subr.mxu0 0.0
    %445 = vmatpush1.xpose.msra.mxu0 %v271
    %446 = vmatprep.subr.mxu0 0.0
    %447 = vmatpush1.xpose.msra.mxu0 %v265
    %448 = vmatprep.subr.mxu0 0.0
    %449 = vmatpush1.xpose.msra.mxu0 %v259
    %450 = vmatprep.subr.mxu0 0.0
    %451 = vmatpush1.xpose.msra.mxu0 %v253
    %452 = vmatprep.subr.mxu0 0.0
    %453 = vmatpush1.xpose.msra.mxu0 %v247
    %454 = vmatprep.subr.mxu0 0.0
    %455 = vmatpush1.xpose.msra.mxu0 %v241
    %456 = vmatprep.subr.mxu0 0.0
    %457 = vmatpush1.xpose.msra.mxu0 %v235
    %458 = vmatprep.subr.mxu0 0.0
    %459 = vmatpush1.xpose.msra.mxu0 %v229
    %460 = vmatprep.subr.mxu0 0.0
    %461 = vmatpush1.xpose.msra.mxu0 %v223
    %462 = vmatprep.subr.mxu0 0.0
    %463 = vmatpush1.xpose.msra.mxu0 %v217
    %464 = vmatprep.subr.mxu0 0.0
    %465 = vmatpush1.xpose.msra.mxu0 %v211
    %466 = vmatprep.subr.mxu0 0.0
    %467 = vmatpush1.xpose.msra.mxu0 %v205
    %468 = vmatprep.subr.mxu0 0.0
    %469 = vmatpush1.xpose.msra.mxu0 %v199
    %470 = vmatprep.subr.mxu0 0.0
    %471 = vmatpush1.xpose.msra.mxu0 %v193
    %472 = vmatprep.subr.mxu0 0.0
    %473 = vmatpush1.xpose.msra.mxu0 %v187
    %474 = vmatprep.subr.mxu0 0.0
    %475 = vmatpush2.xpose.msra.mxu0 0.0
    %476 = vmatprep.subr.mxu0 0.0
    %477 = vmatpush2.xpose.msra.mxu0 0.0
    %478 = vmatprep.subr.mxu0 0.0
    %479 = vmatpush2.xpose.msra.mxu0 0.0
    %480 = vmatprep.subr.mxu0 0.0
    %481 = vmatpush2.xpose.msra.mxu0 0.0
    %482 = vmatprep.subr.mxu0 0.0
    %483 = vmatpush2.xpose.msra.mxu0 0.0
    %484 = vmatprep.subr.mxu0 0.0
    %485 = vmatpush2.xpose.msra.mxu0 0.0
    %486 = vmatprep.subr.mxu0 0.0
    %487 = vmatpush2.xpose.msra.mxu0 0.0
    %488 = vmatprep.subr.mxu0 0.0
    %489 = vmatpush2.xpose.msra.mxu0 0.0
    %490 = vmatprep.subr.mxu0 0.0
    %491 = vmatpush2.xpose.msra.mxu0 0.0
    %492 = vmatprep.subr.mxu0 0.0
    %493 = vmatpush2.xpose.msra.mxu0 0.0
    %494 = vmatprep.subr.mxu0 0.0
    %495 = vmatpush2.xpose.msra.mxu0 0.0
    %496 = vmatprep.subr.mxu0 0.0
    %497 = vmatpush2.xpose.msra.mxu0 0.0
    %498 = vmatprep.subr.mxu0 0.0
    %499 = vmatpush2.xpose.msra.mxu0 0.0
    %500 = vmatprep.subr.mxu0 0.0
    %501 = vmatpush2.xpose.msra.mxu0 0.0
    %502 = vmatprep.subr.mxu0 0.0
    %503 = vmatpush2.xpose.msra.mxu0 0.0
    %504 = vmatprep.subr.mxu0 0.0
    %505 = vmatpush2.xpose.msra.mxu0 0.0
    %506 = vmatprep.mubr.f32.mxu0 0.0
    %507 = vmatmul.mubr.f32.gmra.mxu0 %v364
    %v508 = vpop.f32.mrf.mxu0
    %v509 = vadd.f32 0.0, %v508
    %v510 = vpop.f32.mrf.mxu0
    %511 = vmatprep.mubr.f32.mxu0 0.0
    %512 = vmatmul.mubr.f32.gmra.mxu0 %v369
    %v513 = vpop.f32.mrf.mxu0
    %v514 = vadd.f32 0.0, %v513
    %v515 = vpop.f32.mrf.mxu0
    %516 = vmatprep.mubr.f32.mxu0 0.0
    %517 = vmatmul.mubr.f32.gmra.mxu0 %v374
    %v518 = vpop.f32.mrf.mxu0
    %v519 = vadd.f32 0.0, %v518
    %v520 = vpop.f32.mrf.mxu0
    %521 = vmatprep.mubr.f32.mxu0 0.0
    %522 = vmatmul.mubr.f32.gmra.mxu0 %v379
    %v523 = vpop.f32.mrf.mxu0
    %v524 = vadd.f32 0.0, %v523
    %v525 = vpop.f32.mrf.mxu0
    %526 = vmatprep.mubr.f32.mxu0 0.0
    %527 = vmatmul.mubr.f32.gmra.mxu0 %v384
    %v528 = vpop.f32.mrf.mxu0
    %v529 = vadd.f32 0.0, %v528
    %v530 = vpop.f32.mrf.mxu0
    %531 = vmatprep.mubr.f32.mxu0 0.0
    %532 = vmatmul.mubr.f32.gmra.mxu0 %v389
    %v533 = vpop.f32.mrf.mxu0
    %v534 = vadd.f32 0.0, %v533
    %v535 = vpop.f32.mrf.mxu0
    %536 = vmatprep.mubr.f32.mxu0 0.0
    %537 = vmatmul.mubr.f32.gmra.mxu0 %v394
    %v538 = vpop.f32.mrf.mxu0
    %v539 = vadd.f32 0.0, %v538
    %v540 = vpop.f32.mrf.mxu0
    %541 = vmatprep.mubr.f32.mxu0 0.0
    %542 = vmatmul.mubr.f32.gmra.mxu0 %v399
    %v543 = vpop.f32.mrf.mxu0
    %v544 = vadd.f32 0.0, %v543
    %v545 = vpop.f32.mrf.mxu0
    %546 = vmatprep.mubr.f32.mxu0 0.0
    %547 = vmatmul.mubr.f32.gmra.mxu0 %v404
    %v548 = vpop.f32.mrf.mxu0
    %v549 = vadd.f32 0.0, %v548
    %v550 = vpop.f32.mrf.mxu0
    %551 = vmatprep.mubr.f32.mxu0 0.0
    %552 = vmatmul.mubr.f32.gmra.mxu0 %v409
    %v553 = vpop.f32.mrf.mxu0
    %v554 = vadd.f32 0.0, %v553
    %v555 = vpop.f32.mrf.mxu0
    %556 = vmatprep.mubr.f32.mxu0 0.0
    %557 = vmatmul.mubr.f32.gmra.mxu0 %v414
    %v558 = vpop.f32.mrf.mxu0
    %v559 = vadd.f32 0.0, %v558
    %v560 = vpop.f32.mrf.mxu0
    %561 = vmatprep.mubr.f32.mxu0 0.0
    %562 = vmatmul.mubr.f32.gmra.mxu0 %v419
    %v563 = vpop.f32.mrf.mxu0
    %v564 = vadd.f32 0.0, %v563
    %v565 = vpop.f32.mrf.mxu0
    %566 = vmatprep.mubr.f32.mxu0 0.0
    %567 = vmatmul.mubr.f32.gmra.mxu0 %v424
    %v568 = vpop.f32.mrf.mxu0
    %v569 = vadd.f32 0.0, %v568
    %v570 = vpop.f32.mrf.mxu0
    %571 = vmatprep.mubr.f32.mxu0 0.0
    %572 = vmatmul.mubr.f32.gmra.mxu0 %v429
    %v573 = vpop.f32.mrf.mxu0
    %v574 = vadd.f32 0.0, %v573
    %v575 = vpop.f32.mrf.mxu0
    %576 = vmatprep.mubr.f32.mxu0 0.0
    %577 = vmatmul.mubr.f32.gmra.mxu0 %v434
    %v578 = vpop.f32.mrf.mxu0
    %v579 = vadd.f32 0.0, %v578
    %v580 = vpop.f32.mrf.mxu0
    %581 = vmatprep.mubr.f32.mxu0 0.0
    %582 = vmatmul.mubr.f32.gmra.mxu0 %v439
    %v583 = vpop.f32.mrf.mxu0
    %v584 = vadd.f32 0.0, %v583
    %v585 = vpop.f32.mrf.mxu0
    %586 = vdwg.mxu0
    %v587 = vlaneseq
    %v588 = vand.u32 %v587, 127
    %vm589 = vcmp.lt.s32.totalorder %v588, 6
    %v590 = vsel %vm589, %v509, -1e+30
    %v591 = vsel %vm589, %v514, -1e+30
    %v592 = vsel %vm589, %v519, -1e+30
    %v593 = vsel %vm589, %v524, -1e+30
    %v594 = vsel %vm589, %v529, -1e+30
    %v595 = vsel %vm589, %v534, -1e+30
    %v596 = vsel %vm589, %v539, -1e+30
    %v597 = vsel %vm589, %v544, -1e+30
    %v598 = vsel %vm589, %v549, -1e+30
    %v599 = vsel %vm589, %v554, -1e+30
    %v600 = vsel %vm589, %v559, -1e+30
    %v601 = vsel %vm589, %v564, -1e+30
    %v602 = vsel %vm589, %v569, -1e+30
    %v603 = vsel %vm589, %v574, -1e+30
    %v604 = vsel %vm589, %v579, -1e+30
    %v605 = vsel %vm589, %v584, -1e+30
    %606 = vmax.xlane.f32.xlu0 %v590
    %v607 = vpop.xlane.xlu0 %606
    %608 = vmax.xlane.f32.xlu0 %v591
    %v609 = vpop.xlane.xlu0 %608
    %610 = vmax.xlane.f32.xlu0 %v592
    %v611 = vpop.xlane.xlu0 %610
    %612 = vmax.xlane.f32.xlu0 %v593
    %v613 = vpop.xlane.xlu0 %612
    %614 = vmax.xlane.f32.xlu0 %v594
    %v615 = vpop.xlane.xlu0 %614
    %616 = vmax.xlane.f32.xlu0 %v595
    %v617 = vpop.xlane.xlu0 %616
    %618 = vmax.xlane.f32.xlu0 %v596
    %v619 = vpop.xlane.xlu0 %618
    %620 = vmax.xlane.f32.xlu0 %v597
    %v621 = vpop.xlane.xlu0 %620
    %622 = vmax.xlane.f32.xlu0 %v598
    %v623 = vpop.xlane.xlu0 %622
    %624 = vmax.xlane.f32.xlu0 %v599
    %v625 = vpop.xlane.xlu0 %624
    %626 = vmax.xlane.f32.xlu0 %v600
    %v627 = vpop.xlane.xlu0 %626
    %628 = vmax.xlane.f32.xlu0 %v601
    %v629 = vpop.xlane.xlu0 %628
    %630 = vmax.xlane.f32.xlu0 %v602
    %v631 = vpop.xlane.xlu0 %630
    %632 = vmax.xlane.f32.xlu0 %v603
    %v633 = vpop.xlane.xlu0 %632
    %634 = vmax.xlane.f32.xlu0 %v604
    %v635 = vpop.xlane.xlu0 %634
    %636 = vmax.xlane.f32.xlu0 %v605
    %v637 = vpop.xlane.xlu0 %636
    %v638 = vsub.f32 %v590, %v607
    %v639 = vsub.f32 %v591, %v609
    %v640 = vsub.f32 %v592, %v611
    %v641 = vsub.f32 %v593, %v613
    %v642 = vsub.f32 %v594, %v615
    %v643 = vsub.f32 %v595, %v617
    %v644 = vsub.f32 %v596, %v619
    %v645 = vsub.f32 %v597, %v621
    %v646 = vsub.f32 %v598, %v623
    %v647 = vsub.f32 %v599, %v625
    %v648 = vsub.f32 %v600, %v627
    %v649 = vsub.f32 %v601, %v629
    %v650 = vsub.f32 %v602, %v631
    %v651 = vsub.f32 %v603, %v633
    %v652 = vsub.f32 %v604, %v635
    %v653 = vsub.f32 %v605, %v637
    %v654 = vmul.f32 %v638, 1.442695
    %v655 = vpow.pop %v654
    %v656 = vmul.f32 %v639, 1.442695
    %v657 = vpow.pop %v656
    %v658 = vmul.f32 %v640, 1.442695
    %v659 = vpow.pop %v658
    %v660 = vmul.f32 %v641, 1.442695
    %v661 = vpow.pop %v660
    %v662 = vmul.f32 %v642, 1.442695
    %v663 = vpow.pop %v662
    %v664 = vmul.f32 %v643, 1.442695
    %v665 = vpow.pop %v664
    %v666 = vmul.f32 %v644, 1.442695
    %v667 = vpow.pop %v666
    %v668 = vmul.f32 %v645, 1.442695
    %v669 = vpow.pop %v668
    %v670 = vmul.f32 %v646, 1.442695
    %v671 = vpow.pop %v670
    %v672 = vmul.f32 %v647, 1.442695
    %v673 = vpow.pop %v672
    %v674 = vmul.f32 %v648, 1.442695
    %v675 = vpow.pop %v674
    %v676 = vmul.f32 %v649, 1.442695
    %v677 = vpow.pop %v676
    %v678 = vmul.f32 %v650, 1.442695
    %v679 = vpow.pop %v678
    %v680 = vmul.f32 %v651, 1.442695
    %v681 = vpow.pop %v680
    %v682 = vmul.f32 %v652, 1.442695
    %v683 = vpow.pop %v682
    %v684 = vmul.f32 %v653, 1.442695
    %v685 = vpow.pop %v684
    %686 = vadd.xlane.f32.xlu0 %v655
    %v687 = vpop.xlane.xlu0 %686
    %688 = vadd.xlane.f32.xlu0 %v657
    %v689 = vpop.xlane.xlu0 %688
    %690 = vadd.xlane.f32.xlu0 %v659
    %v691 = vpop.xlane.xlu0 %690
    %692 = vadd.xlane.f32.xlu0 %v661
    %v693 = vpop.xlane.xlu0 %692
    %694 = vadd.xlane.f32.xlu0 %v663
    %v695 = vpop.xlane.xlu0 %694
    %696 = vadd.xlane.f32.xlu0 %v665
    %v697 = vpop.xlane.xlu0 %696
    %698 = vadd.xlane.f32.xlu0 %v667
    %v699 = vpop.xlane.xlu0 %698
    %700 = vadd.xlane.f32.xlu0 %v669
    %v701 = vpop.xlane.xlu0 %700
    %702 = vadd.xlane.f32.xlu0 %v671
    %v703 = vpop.xlane.xlu0 %702
    %704 = vadd.xlane.f32.xlu0 %v673
    %v705 = vpop.xlane.xlu0 %704
    %706 = vadd.xlane.f32.xlu0 %v675
    %v707 = vpop.xlane.xlu0 %706
    %708 = vadd.xlane.f32.xlu0 %v677
    %v709 = vpop.xlane.xlu0 %708
    %710 = vadd.xlane.f32.xlu0 %v679
    %v711 = vpop.xlane.xlu0 %710
    %712 = vadd.xlane.f32.xlu0 %v681
    %v713 = vpop.xlane.xlu0 %712
    %714 = vadd.xlane.f32.xlu0 %v683
    %v715 = vpop.xlane.xlu0 %714
    %716 = vadd.xlane.f32.xlu0 %v685
    %v717 = vpop.xlane.xlu0 %716
    %v718 = vrcp.pop %v687
    %v719 = vrcp.pop %v689
    %v720 = vrcp.pop %v691
    %v721 = vrcp.pop %v693
    %v722 = vrcp.pop %v695
    %v723 = vrcp.pop %v697
    %v724 = vrcp.pop %v699
    %v725 = vrcp.pop %v701
    %v726 = vrcp.pop %v703
    %v727 = vrcp.pop %v705
    %v728 = vrcp.pop %v707
    %v729 = vrcp.pop %v709
    %v730 = vrcp.pop %v711
    %v731 = vrcp.pop %v713
    %v732 = vrcp.pop %v715
    %v733 = vrcp.pop %v717
    %v734 = vmul.f32 %v655, %v718
    %v735 = vmul.f32 %v657, %v719
    %v736 = vmul.f32 %v659, %v720
    %v737 = vmul.f32 %v661, %v721
    %v738 = vmul.f32 %v663, %v722
    %v739 = vmul.f32 %v665, %v723
    %v740 = vmul.f32 %v667, %v724
    %v741 = vmul.f32 %v669, %v725
    %v742 = vmul.f32 %v671, %v726
    %v743 = vmul.f32 %v673, %v727
    %v744 = vmul.f32 %v675, %v728
    %v745 = vmul.f32 %v677, %v729
    %v746 = vmul.f32 %v679, %v730
    %v747 = vmul.f32 %v681, %v731
    %v748 = vmul.f32 %v683, %v732
    %v749 = vmul.f32 %v685, %v733
    %750 = vmatprep.subr.mxu0 0.0
    %751 = vmatpush1.msra.mxu0 %v279
    %752 = vmatprep.subr.mxu0 0.0
    %753 = vmatpush1.msra.mxu0 %v273
    %754 = vmatprep.subr.mxu0 0.0
    %755 = vmatpush1.msra.mxu0 %v267
    %756 = vmatprep.subr.mxu0 0.0
    %757 = vmatpush1.msra.mxu0 %v261
    %758 = vmatprep.subr.mxu0 0.0
    %759 = vmatpush1.msra.mxu0 %v255
    %760 = vmatprep.subr.mxu0 0.0
    %761 = vmatpush1.msra.mxu0 %v249
    %762 = vmatprep.subr.mxu0 0.0
    %763 = vmatpush1.msra.mxu0 %v243
    %764 = vmatprep.subr.mxu0 0.0
    %765 = vmatpush1.msra.mxu0 %v237
    %766 = vmatprep.subr.mxu0 0.0
    %767 = vmatpush1.msra.mxu0 %v231
    %768 = vmatprep.subr.mxu0 0.0
    %769 = vmatpush1.msra.mxu0 %v225
    %770 = vmatprep.subr.mxu0 0.0
    %771 = vmatpush1.msra.mxu0 %v219
    %772 = vmatprep.subr.mxu0 0.0
    %773 = vmatpush1.msra.mxu0 %v213
    %774 = vmatprep.subr.mxu0 0.0
    %775 = vmatpush1.msra.mxu0 %v207
    %776 = vmatprep.subr.mxu0 0.0
    %777 = vmatpush1.msra.mxu0 %v201
    %778 = vmatprep.subr.mxu0 0.0
    %779 = vmatpush1.msra.mxu0 %v195
    %780 = vmatprep.subr.mxu0 0.0
    %781 = vmatpush1.msra.mxu0 %v189
    %782 = vmatprep.subr.mxu0 0.0
    %783 = vmatpush2.msra.mxu0 0.0
    %784 = vmatprep.subr.mxu0 0.0
    %785 = vmatpush2.msra.mxu0 0.0
    %786 = vmatprep.subr.mxu0 0.0
    %787 = vmatpush2.msra.mxu0 0.0
    %788 = vmatprep.subr.mxu0 0.0
    %789 = vmatpush2.msra.mxu0 0.0
    %790 = vmatprep.subr.mxu0 0.0
    %791 = vmatpush2.msra.mxu0 0.0
    %792 = vmatprep.subr.mxu0 0.0
    %793 = vmatpush2.msra.mxu0 0.0
    %794 = vmatprep.subr.mxu0 0.0
    %795 = vmatpush2.msra.mxu0 0.0
    %796 = vmatprep.subr.mxu0 0.0
    %797 = vmatpush2.msra.mxu0 0.0
    %798 = vmatprep.subr.mxu0 0.0
    %799 = vmatpush2.msra.mxu0 0.0
    %800 = vmatprep.subr.mxu0 0.0
    %801 = vmatpush2.msra.mxu0 0.0
    %802 = vmatprep.subr.mxu0 0.0
    %803 = vmatpush2.msra.mxu0 0.0
    %804 = vmatprep.subr.mxu0 0.0
    %805 = vmatpush2.msra.mxu0 0.0
    %806 = vmatprep.subr.mxu0 0.0
    %807 = vmatpush2.msra.mxu0 0.0
    %808 = vmatprep.subr.mxu0 0.0
    %809 = vmatpush2.msra.mxu0 0.0
    %810 = vmatprep.subr.mxu0 0.0
    %811 = vmatpush2.msra.mxu0 0.0
    %812 = vmatprep.subr.mxu0 0.0
    %813 = vmatpush2.msra.mxu0 0.0
    %814 = vmatprep.mubr.f32.mxu0 0.0
    %815 = vmatmul.mubr.f32.gmra.mxu0 %v734
    %v816 = vpop.f32.mrf.mxu0
    %v817 = vadd.f32 0.0, %v816
    %v818 = vpop.f32.mrf.mxu0
    %819 = vmatprep.mubr.f32.mxu0 0.0
    %820 = vmatmul.mubr.f32.gmra.mxu0 %v735
    %v821 = vpop.f32.mrf.mxu0
    %v822 = vadd.f32 0.0, %v821
    %v823 = vpop.f32.mrf.mxu0
    %824 = vmatprep.mubr.f32.mxu0 0.0
    %825 = vmatmul.mubr.f32.gmra.mxu0 %v736
    %v826 = vpop.f32.mrf.mxu0
    %v827 = vadd.f32 0.0, %v826
    %v828 = vpop.f32.mrf.mxu0
    %829 = vmatprep.mubr.f32.mxu0 0.0
    %830 = vmatmul.mubr.f32.gmra.mxu0 %v737
    %v831 = vpop.f32.mrf.mxu0
    %v832 = vadd.f32 0.0, %v831
    %v833 = vpop.f32.mrf.mxu0
    %834 = vmatprep.mubr.f32.mxu0 0.0
    %835 = vmatmul.mubr.f32.gmra.mxu0 %v738
    %v836 = vpop.f32.mrf.mxu0
    %v837 = vadd.f32 0.0, %v836
    %v838 = vpop.f32.mrf.mxu0
    %839 = vmatprep.mubr.f32.mxu0 0.0
    %840 = vmatmul.mubr.f32.gmra.mxu0 %v739
    %v841 = vpop.f32.mrf.mxu0
    %v842 = vadd.f32 0.0, %v841
    %v843 = vpop.f32.mrf.mxu0
    %844 = vmatprep.mubr.f32.mxu0 0.0
    %845 = vmatmul.mubr.f32.gmra.mxu0 %v740
    %v846 = vpop.f32.mrf.mxu0
    %v847 = vadd.f32 0.0, %v846
    %v848 = vpop.f32.mrf.mxu0
    %849 = vmatprep.mubr.f32.mxu0 0.0
    %850 = vmatmul.mubr.f32.gmra.mxu0 %v741
    %v851 = vpop.f32.mrf.mxu0
    %v852 = vadd.f32 0.0, %v851
    %v853 = vpop.f32.mrf.mxu0
    %854 = vmatprep.mubr.f32.mxu0 0.0
    %855 = vmatmul.mubr.f32.gmra.mxu0 %v742
    %v856 = vpop.f32.mrf.mxu0
    %v857 = vadd.f32 0.0, %v856
    %v858 = vpop.f32.mrf.mxu0
    %859 = vmatprep.mubr.f32.mxu0 0.0
    %860 = vmatmul.mubr.f32.gmra.mxu0 %v743
    %v861 = vpop.f32.mrf.mxu0
    %v862 = vadd.f32 0.0, %v861
    %v863 = vpop.f32.mrf.mxu0
    %864 = vmatprep.mubr.f32.mxu0 0.0
    %865 = vmatmul.mubr.f32.gmra.mxu0 %v744
    %v866 = vpop.f32.mrf.mxu0
    %v867 = vadd.f32 0.0, %v866
    %v868 = vpop.f32.mrf.mxu0
    %869 = vmatprep.mubr.f32.mxu0 0.0
    %870 = vmatmul.mubr.f32.gmra.mxu0 %v745
    %v871 = vpop.f32.mrf.mxu0
    %v872 = vadd.f32 0.0, %v871
    %v873 = vpop.f32.mrf.mxu0
    %874 = vmatprep.mubr.f32.mxu0 0.0
    %875 = vmatmul.mubr.f32.gmra.mxu0 %v746
    %v876 = vpop.f32.mrf.mxu0
    %v877 = vadd.f32 0.0, %v876
    %v878 = vpop.f32.mrf.mxu0
    %879 = vmatprep.mubr.f32.mxu0 0.0
    %880 = vmatmul.mubr.f32.gmra.mxu0 %v747
    %v881 = vpop.f32.mrf.mxu0
    %v882 = vadd.f32 0.0, %v881
    %v883 = vpop.f32.mrf.mxu0
    %884 = vmatprep.mubr.f32.mxu0 0.0
    %885 = vmatmul.mubr.f32.gmra.mxu0 %v748
    %v886 = vpop.f32.mrf.mxu0
    %v887 = vadd.f32 0.0, %v886
    %v888 = vpop.f32.mrf.mxu0
    %889 = vmatprep.mubr.f32.mxu0 0.0
    %890 = vmatmul.mubr.f32.gmra.mxu0 %v749
    %v891 = vpop.f32.mrf.mxu0
    %v892 = vadd.f32 0.0, %v891
    %v893 = vpop.f32.mrf.mxu0
    %894 = vdwg.mxu0
    %895 = vst [vmem:[#allocation8] sm:$0xff] %v817
    %896 = vst [vmem:[#allocation8 + $0x8] sm:$0xff] %v822
    %897 = vst [vmem:[#allocation8 + $0x10] sm:$0xff] %v827
    %898 = vst [vmem:[#allocation8 + $0x18] sm:$0xff] %v832
    %899 = vst [vmem:[#allocation8 + $0x20] sm:$0xff] %v837
    %900 = vst [vmem:[#allocation8 + $0x28] sm:$0xff] %v842
    %901 = vst [vmem:[#allocation8 + $0x30] sm:$0xff] %v847
    %902 = vst [vmem:[#allocation8 + $0x38] sm:$0xff] %v852
    %903 = vst [vmem:[#allocation8 + $0x40] sm:$0xff] %v857
    %904 = vst [vmem:[#allocation8 + $0x48] sm:$0xff] %v862
    %905 = vst [vmem:[#allocation8 + $0x50] sm:$0xff] %v867
    %906 = vst [vmem:[#allocation8 + $0x58] sm:$0xff] %v872
    %907 = vst [vmem:[#allocation8 + $0x60] sm:$0xff] %v877
    %908 = vst [vmem:[#allocation8 + $0x68] sm:$0xff] %v882
    %909 = vst [vmem:[#allocation8 + $0x70] sm:$0xff] %v887
    %910 = vst [vmem:[#allocation8 + $0x78] sm:$0xff] %v892
    // Predicated region
    $region26: #{tpu_custom_call.1} parent=1 // pred_check
      _
    $region27: #{tpu_custom_call.1} parent=1 // pred_check_branch
      %912 = sbr.rel (0) target = $region29
    $region28: #{tpu_custom_call.1} parent=1 // pred_region
      %s914 = ssub.s32 2048, 2048
      %915 = vsyncadd [#allocation4], %s914
      %s916 = sshll.u32 [#allocation8], 4
      %s917 = int_to_ptr.vmem [resolvable:$true] %s916
      %922 = dma.vmem_to_hbm [thread:$0]  %s917, 2048, %s3, [#allocation4], 128, 128, 8
    $region29: #{tpu_custom_call.1} parent=1 // pred_fallthru
      _
    // Predicated region
    $region30: #{tpu_custom_call.1} parent=1 // pred_check
      _
    $region31: #{tpu_custom_call.1} parent=1 // pred_check_branch
      %924 = sbr.rel (0) target = $region33
    $region32: #{tpu_custom_call.1} parent=1 // pred_region
      %925 = dma.done [#allocation4], 2048
    $region33: #{tpu_custom_call.1} parent=1 // pred_fallthru
      _
    %926 = vsyncpa [#allocation3], 1
    %927 = vsyncpa [#allocation6], 1
    %928 = vsyncpa [#allocation4], 1

</llo_original>
